<compile_context>
chip_gen: v6e
topology: v6e:2x2x1
jax: 0.10.0
libtpu: 0.0.40
codegen_flags: <defaults>
</compile_context>

<pallas_src>
import functools

import jax
import jax.numpy as jnp
from jax.experimental import pallas as pl
from jax.experimental.pallas import tpu as pltpu


OUT_FEATURES = 2  # MyModule's output layer width (2-class softmax).


def _mlp_kernel(x_ref, p_ref, o_ref, *, in_features, num_units):
    """Fused MLP forward on one batch tile.

    x_ref: (TB, in_features)      activation tile (batch -> sublanes,
                                  features -> lanes)
    p_ref: (IN+3+2*HID, HID)      packed parameter slab (see pack_params)
    o_ref: (TB, 2)                softmax probabilities
    """
    IN, HID = in_features, num_units
    r_w0 = 0
    r_b0 = IN
    r_w1 = IN + 1
    r_b1 = IN + 1 + HID
    r_w2 = IN + 2 + HID
    r_b2 = IN + 2 + 2 * HID

    x = x_ref[...]                                            # (TB, IN)

    # Static slices of the packed parameter slab (tiny, VMEM-resident).
    w0 = p_ref[r_w0:r_w0 + IN, :]                             # (IN, HID)
    b0 = p_ref[r_b0:r_b0 + 1, :]                              # (1, HID)
    w1 = p_ref[r_w1:r_w1 + HID, :]                            # (HID, HID)
    b1 = p_ref[r_b1:r_b1 + 1, :]                              # (1, HID)
    w2 = p_ref[r_w2:r_w2 + HID, :]   # (HID, HID): cols >= 2 are zero padding
    b2 = p_ref[r_b2:r_b2 + 1, :]                              # (1, HID)

    # dense0 + ReLU
    h0 = jnp.maximum(jnp.dot(x, w0, preferred_element_type=jnp.float32) + b0, 0.0)

    # Dropout(p=0.5): identity (inference semantics).
    # TODO(synk): training-mode dropout (pltpu.prng_seed/prng_random_bits
    # Bernoulli mask) not emitted.

    # dense1 + ReLU
    h1 = jnp.maximum(jnp.dot(h0, w1, preferred_element_type=jnp.float32) + b1, 0.0)

    # output layer: padded to HID lanes; only columns 0 and 1 are real logits.
    logits = jnp.dot(h1, w2, preferred_element_type=jnp.float32) + b2

    # 2-class softmax == sigmoid(l1 - l0): exact and numerically stable,
    # avoids the cross-lane max/sum reductions of a generic softmax.  The
    # sigmoid is computed via tanh so it runs entirely on the EUP.
    d = logits[:, 1:2] - logits[:, 0:1]                       # (TB, 1)
    p1 = 0.5 * (jnp.tanh(0.5 * d) + 1.0)
    p0 = 1.0 - p1                                             # p0 + p1 == 1 exactly
    o_ref[...] = jnp.concatenate([p0, p1], axis=-1)           # (TB, 2)


def pack_params(w0, b0, w1, b1, w2, b2):
    """Pack all weights/biases into one (IN + 3 + 2*HID, HID) f32 slab.

    One packed input means one DMA descriptor per pipeline step instead of
    six; for a kernel this small the prologue *is* the kernel.  The output
    layer (HID x 2 weight, 2-wide bias) is zero-padded to HID columns.
    Weights are stored (in_features, out_features) so the kernel computes
    x @ W + b directly (PyTorch stores Linear weight as (out, in)).
    """
    IN, HID = w0.shape
    assert w1.shape == (HID, HID)
    assert w2.shape == (HID, OUT_FEATURES)
    pad = HID - OUT_FEATURES
    w2p = jnp.pad(w2, ((0, 0), (0, pad)))
    b2p = jnp.pad(jnp.reshape(b2, (1, -1)), ((0, 0), (0, pad)))
    return jnp.concatenate(
        [
            w0,
            jnp.reshape(b0, (1, -1)),
            w1,
            jnp.reshape(b1, (1, -1)),
            w2p,
            b2p,
        ],
        axis=0,
    ).astype(jnp.float32)


@functools.partial(jax.jit, static_argnames=("block_b",))
def my_module_forward(x, params, *, block_b=2048):
    """x: (B, 20) f32, params: packed slab -> (B, 2) f32 softmax probabilities."""
    B, IN = x.shape
    HID = params.shape[1]
    assert params.shape[0] == IN + 3 + 2 * HID

    # Batch tile: at most block_b rows, rounded up to the f32 sublane
    # multiple of 8.  Pad the batch so it divides evenly; slice afterwards.
    # (TB=2048, IN=20 -> 160 KiB per input buffer; trivially fits VMEM even
    # double-buffered on the 64 MiB v7x cores.)
    tb = min(block_b, max(B, 1))
    tb = ((tb + 7) // 8) * 8
    nb = pl.cdiv(B, tb)
    b_pad = nb * tb
    if b_pad != B:
        x = jnp.pad(x, ((0, b_pad - B), (0, 0)))

    kernel = functools.partial(_mlp_kernel, in_features=IN, num_units=HID)

    out = pl.pallas_call(
        kernel,
        out_shape=jax.ShapeDtypeStruct((b_pad, OUT_FEATURES), jnp.float32),
        grid=(nb,),
        in_specs=[
            pl.BlockSpec((tb, IN), lambda i: (i, 0)),
            # Constant block index -> parameter slab stays VMEM-resident
            # across all grid steps (no re-fetch).
            pl.BlockSpec(params.shape, lambda i: (0, 0)),
        ],
        out_specs=pl.BlockSpec((tb, OUT_FEATURES), lambda i: (i, 0)),
        compiler_params=pltpu.CompilerParams(
            # Independent batch tiles: shard across TensorCores (2 on v7x);
            # harmless no-op on single-core v5e/v6e.
            dimension_semantics=("parallel",),
        ),
    )(x, params)
    return out[:B]


def init_params(key, in_features=20, num_units=10, out_features=2):
    """Deterministic PyTorch-style (uniform +-1/sqrt(fan_in)) Linear init."""
    ks = jax.random.split(key, 6)

    def linear(kw, kb, fan_in, fan_out):
        bound = 1.0 / jnp.sqrt(fan_in)
        w = jax.random.uniform(kw, (fan_in, fan_out), jnp.float32, -bound, bound)
        b = jax.random.uniform(kb, (1, fan_out), jnp.float32, -bound, bound)
        return w, b

    w0, b0 = linear(ks[0], ks[1], in_features, num_units)
    w1, b1 = linear(ks[2], ks[3], num_units, num_units)
    w2, b2 = linear(ks[4], ks[5], num_units, out_features)
    return w0, b0, w1, b1, w2, b2


if __name__ == "__main__":
    key = jax.random.PRNGKey(0)
    k_x, k_p = jax.random.split(key)

    IN, HID, OUT = 20, 10, 2
    w0, b0, w1, b1, w2, b2 = init_params(k_p, IN, HID, OUT)
    params = pack_params(w0, b0, w1, b1, w2, b2)

    def reference(x):
        h = jnp.maximum(x @ w0 + b0, 0.0)
        h = jnp.maximum(h @ w1 + b1, 0.0)
        return jax.nn.softmax(h @ w2 + b2, axis=-1)

    # Cases: single-tile small batch, batch not a multiple of 8 (padding),
    # and a multi-step grid with a partial final tile.
    for B, block_b in ((8, 2048), (5, 2048), (200, 64)):
        x = jax.random.normal(jax.random.fold_in(k_x, B), (B, IN), dtype=jnp.float32)
        out = my_module_forward(x, params, block_b=block_b)
        jax.block_until_ready(out)

        assert out.shape == (B, OUT)
        assert jnp.allclose(jnp.sum(out, axis=-1), 1.0, atol=1e-5)
        assert jnp.allclose(out, reference(x), atol=1e-5, rtol=1e-5)

    print("KERNEL_OK")
</pallas_src>

<mosaic_0001>
module attributes {stable_mosaic.version = 11 : i64} {
  func.func @_mlp_kernel(%arg0: i32, %arg1: memref<8x20xf32, #tpu.memory_space<vmem>>, %arg2: memref<43x10xf32, #tpu.memory_space<vmem>>, %arg3: memref<8x2xf32, #tpu.memory_space<vmem>>) attributes {dimension_semantics = [#tpu.dimension_semantics<parallel>], iteration_bounds = array<i64: 1>, scalar_prefetch = 0 : i64, scratch_operands = 0 : i64, tpu.core_type = #tpu.core_type<tc>, window_params = [{transform_indices = @transform_0, window_bounds = array<i64: 8, 20>}, {pipeline_mode = #tpu.pipeline_mode<synchronous>, transform_indices = @transform_1, window_bounds = array<i64: 43, 10>}, {transform_indices = @transform_2, window_bounds = array<i64: 8, 2>}]} {
    %c0 = arith.constant 0 : index
    %c0_0 = arith.constant 0 : index
    %0 = vector.load %arg1[%c0, %c0_0] : memref<8x20xf32, #tpu.memory_space<vmem>>, vector<8x20xf32>
    %c0_1 = arith.constant 0 : index
    %c0_2 = arith.constant 0 : index
    %1 = vector.load %arg2[%c0_1, %c0_2] : memref<43x10xf32, #tpu.memory_space<vmem>>, vector<20x10xf32>
    %c20 = arith.constant 20 : index
    %c0_3 = arith.constant 0 : index
    %2 = vector.load %arg2[%c20, %c0_3] : memref<43x10xf32, #tpu.memory_space<vmem>>, vector<1x10xf32>
    %c21 = arith.constant 21 : index
    %c0_4 = arith.constant 0 : index
    %3 = vector.load %arg2[%c21, %c0_4] : memref<43x10xf32, #tpu.memory_space<vmem>>, vector<10x10xf32>
    %c31 = arith.constant 31 : index
    %c0_5 = arith.constant 0 : index
    %4 = vector.load %arg2[%c31, %c0_5] : memref<43x10xf32, #tpu.memory_space<vmem>>, vector<1x10xf32>
    %c32 = arith.constant 32 : index
    %c0_6 = arith.constant 0 : index
    %5 = vector.load %arg2[%c32, %c0_6] : memref<43x10xf32, #tpu.memory_space<vmem>>, vector<10x10xf32>
    %c42 = arith.constant 42 : index
    %c0_7 = arith.constant 0 : index
    %6 = vector.load %arg2[%c42, %c0_7] : memref<43x10xf32, #tpu.memory_space<vmem>>, vector<1x10xf32>
    %cst = arith.constant dense<0.000000e+00> : vector<8x10xf32>
    %7 = tpu.matmul %0, %1, %cst {dimension_numbers = #tpu.dot_dimension_numbers<[1], [0], [0], [1], [0, 0, 1, 1], [], []>} : vector<8x20xf32>, vector<20x10xf32>, vector<8x10xf32> -> vector<8x10xf32>
    %8 = vector.broadcast %2 : vector<1x10xf32> to vector<8x10xf32>
    %9 = arith.addf %7, %8 : vector<8x10xf32>
    %cst_8 = arith.constant 0.000000e+00 : f32
    %10 = vector.broadcast %cst_8 : f32 to vector<8x10xf32>
    %11 = arith.maximumf %9, %10 : vector<8x10xf32>
    %cst_9 = arith.constant dense<0.000000e+00> : vector<8x10xf32>
    %12 = tpu.matmul %11, %3, %cst_9 {dimension_numbers = #tpu.dot_dimension_numbers<[1], [0], [0], [1], [0, 0, 1, 1], [], []>} : vector<8x10xf32>, vector<10x10xf32>, vector<8x10xf32> -> vector<8x10xf32>
    %13 = vector.broadcast %4 : vector<1x10xf32> to vector<8x10xf32>
    %14 = arith.addf %12, %13 : vector<8x10xf32>
    %cst_10 = arith.constant 0.000000e+00 : f32
    %15 = vector.broadcast %cst_10 : f32 to vector<8x10xf32>
    %16 = arith.maximumf %14, %15 : vector<8x10xf32>
    %cst_11 = arith.constant dense<0.000000e+00> : vector<8x10xf32>
    %17 = tpu.matmul %16, %5, %cst_11 {dimension_numbers = #tpu.dot_dimension_numbers<[1], [0], [0], [1], [0, 0, 1, 1], [], []>} : vector<8x10xf32>, vector<10x10xf32>, vector<8x10xf32> -> vector<8x10xf32>
    %18 = vector.broadcast %6 : vector<1x10xf32> to vector<8x10xf32>
    %19 = arith.addf %17, %18 : vector<8x10xf32>
    %20 = vector.extract_strided_slice %19 {offsets = [0, 1], sizes = [8, 1], strides = [1, 1]} : vector<8x10xf32> to vector<8x1xf32>
    %21 = vector.extract_strided_slice %19 {offsets = [0, 0], sizes = [8, 1], strides = [1, 1]} : vector<8x10xf32> to vector<8x1xf32>
    %22 = arith.subf %20, %21 : vector<8x1xf32>
    %cst_12 = arith.constant 5.000000e-01 : f32
    %23 = vector.broadcast %cst_12 : f32 to vector<8x1xf32>
    %24 = arith.mulf %23, %22 : vector<8x1xf32>
    %25 = math.tanh %24 : vector<8x1xf32>
    %cst_13 = arith.constant 1.000000e+00 : f32
    %26 = vector.broadcast %cst_13 : f32 to vector<8x1xf32>
    %27 = arith.addf %25, %26 : vector<8x1xf32>
    %cst_14 = arith.constant 5.000000e-01 : f32
    %28 = vector.broadcast %cst_14 : f32 to vector<8x1xf32>
    %29 = arith.mulf %28, %27 : vector<8x1xf32>
    %cst_15 = arith.constant 1.000000e+00 : f32
    %30 = vector.broadcast %cst_15 : f32 to vector<8x1xf32>
    %31 = arith.subf %30, %29 : vector<8x1xf32>
    %32 = tpu.concatenate %31, %29 in 1 : vector<8x1xf32>, vector<8x1xf32> -> vector<8x2xf32>
    %c0_16 = arith.constant 0 : index
    %c0_17 = arith.constant 0 : index
    %33 = vector.load %arg3[%c0_16, %c0_17] : memref<8x2xf32, #tpu.memory_space<vmem>>, vector<8x2xf32>
    tpu.vector_store %arg3[%c0_16, %c0_17], %32 {strides = array<i32>} : memref<8x2xf32, #tpu.memory_space<vmem>>, vector<8x2xf32>,
    return
  }
  func.func @transform_0(%arg0: i32) -> (i32, i32) {
    %c0_i32 = arith.constant 0 : i32
    %c0_i32_0 = arith.constant 0 : i32
    return %arg0, %c0_i32 : i32, i32
  }
  func.func @transform_1(%arg0: i32) -> (i32, i32) {
    %c0_i32 = arith.constant 0 : i32
    %c0_i32_0 = arith.constant 0 : i32
    %c0_i32_1 = arith.constant 0 : i32
    return %c0_i32, %c0_i32_0 : i32, i32
  }
  func.func @transform_2(%arg0: i32) -> (i32, i32) {
    %c0_i32 = arith.constant 0 : i32
    %c0_i32_0 = arith.constant 0 : i32
    return %arg0, %c0_i32 : i32, i32
  }
}

</mosaic_0001>

<llo_original>
// kernel: my_module_forward.1
$region0: #{my_module_forward.1}
  #allocation0 [shape = 'u32[]', space=smem, size = 0x4, offset = 0x4, fixed_abs, tag = 'smem constant byte address 0x4 - core index']
  #allocation1 [shape = 'u32[144,128]{1,0:T(1,128)}', space=vmem, size = 0x12000, scoped, tag = 'internal scratch']
  %s0 = inlined_call_operand.vmem [shape: f32[8,20], index: 0, kind: input, shape index: {}]
  %s1 = inlined_call_operand.vmem [shape: f32[43,10], index: 1, kind: input, shape index: {}]
  %s2 = inlined_call_operand.vmem [shape: f32[8,2], index: 2, kind: output, shape index: {}]
  %s3 = sld [smem:[#allocation0]]
  $region18: #{my_module_forward.1} parent=0
    _
  %s5 = ssub.s32 1, %s3
  %s6 = scalar_select 0, %s5, %s3
  // Predicated region
  $region2: #{my_module_forward.1} parent=0 // pred_check
    _
  $region3: #{my_module_forward.1} parent=0 // pred_check_branch
    %8 = sbr.rel (0) target = $region5
  $region4: #{my_module_forward.1} parent=0 // pred_region
    _
  $region5: #{my_module_forward.1} parent=0 // pred_fallthru
    _
  // Predicated region
  $region6: #{my_module_forward.1} parent=0 // pred_check
    _
  $region7: #{my_module_forward.1} parent=0 // pred_check_branch
    %10 = sbr.rel (0) target = $region9
  $region8: #{my_module_forward.1} parent=0 // pred_region
    _
  $region9: #{my_module_forward.1} parent=0 // pred_fallthru
    _
  %v11 = vld [vmem:[%s0] sm:$0xff]
  %v12 = vld [vmem:[%s1] sm:$0xff]
  %v13 = vld [vmem:[%s1 + $0x8] sm:$0xff]
  %v14 = vld [vmem:[%s1 + $0x10] sm:$0xf]
  %v15 = vld [vmem:[%s1 + $0x14] sm:$0x1]
  %v16 = vld [vmem:[%s1 + $0x15] sm:$0xff]
  %v17 = vld [vmem:[%s1 + $0x1d] sm:$0x3]
  %v18 = vld [vmem:[%s1 + $0x1f] sm:$0x1]
  %v19 = vld [vmem:[%s1 + $0x20] sm:$0xff]
  %v20 = vld [vmem:[%s1 + $0x28] sm:$0x3]
  %v21 = vld [vmem:[%s1 + $0x2a] sm:$0x1]
  %v22 = vlaneseq
  %v23 = vshrl.u32 %v22, 7
  %v24 = vsub.s32 0, %v23
  %v25 = vrot.slane %v15, %v24
  %vm26 = vcmask 162816
  %v28 = vsel %vm26, %v11, 0
  %vm30 = vcmask 1043456
  %v32 = vsel %vm30, %v14, 0
  %34 = vmatprep.subr.mxu0 0.0
  %35 = vmatpush1.msra.mxu0 0.0
  %36 = vmatprep.subr.mxu0 0.0
  %37 = vmatpush1.msra.mxu0 0.0
  %38 = vmatprep.subr.mxu0 0.0
  %39 = vmatpush1.msra.mxu0 0.0
  %40 = vmatprep.subr.mxu0 0.0
  %41 = vmatpush1.msra.mxu0 0.0
  %42 = vmatprep.subr.mxu0 0.0
  %43 = vmatpush1.msra.mxu0 0.0
  %44 = vmatprep.subr.mxu0 0.0
  %45 = vmatpush1.msra.mxu0 0.0
  %46 = vmatprep.subr.mxu0 0.0
  %47 = vmatpush1.msra.mxu0 0.0
  %48 = vmatprep.subr.mxu0 0.0
  %49 = vmatpush1.msra.mxu0 0.0
  %50 = vmatprep.subr.mxu0 0.0
  %51 = vmatpush1.msra.mxu0 0.0
  %52 = vmatprep.subr.mxu0 0.0
  %53 = vmatpush1.msra.mxu0 0.0
  %54 = vmatprep.subr.mxu0 0.0
  %55 = vmatpush1.msra.mxu0 0.0
  %56 = vmatprep.subr.mxu0 0.0
  %57 = vmatpush1.msra.mxu0 0.0
  %58 = vmatprep.subr.mxu0 0.0
  %59 = vmatpush1.msra.mxu0 0.0
  %60 = vmatprep.subr.mxu0 0.0
  %61 = vmatpush1.msra.mxu0 %v32
  %62 = vmatprep.subr.mxu0 0.0
  %63 = vmatpush1.msra.mxu0 %v13
  %64 = vmatprep.subr.mxu0 0.0
  %65 = vmatpush1.msra.mxu0 %v12
  %66 = vmatprep.subr.mxu0 0.0
  %67 = vmatpush2.msra.mxu0 0.0
  %68 = vmatprep.subr.mxu0 0.0
  %69 = vmatpush2.msra.mxu0 0.0
  %70 = vmatprep.subr.mxu0 0.0
  %71 = vmatpush2.msra.mxu0 0.0
  %72 = vmatprep.subr.mxu0 0.0
  %73 = vmatpush2.msra.mxu0 0.0
  %74 = vmatprep.subr.mxu0 0.0
  %75 = vmatpush2.msra.mxu0 0.0
  %76 = vmatprep.subr.mxu0 0.0
  %77 = vmatpush2.msra.mxu0 0.0
  %78 = vmatprep.subr.mxu0 0.0
  %79 = vmatpush2.msra.mxu0 0.0
  %80 = vmatprep.subr.mxu0 0.0
  %81 = vmatpush2.msra.mxu0 0.0
  %82 = vmatprep.subr.mxu0 0.0
  %83 = vmatpush2.msra.mxu0 0.0
  %84 = vmatprep.subr.mxu0 0.0
  %85 = vmatpush2.msra.mxu0 0.0
  %86 = vmatprep.subr.mxu0 0.0
  %87 = vmatpush2.msra.mxu0 0.0
  %88 = vmatprep.subr.mxu0 0.0
  %89 = vmatpush2.msra.mxu0 0.0
  %90 = vmatprep.subr.mxu0 0.0
  %91 = vmatpush2.msra.mxu0 0.0
  %92 = vmatprep.subr.mxu0 0.0
  %93 = vmatpush2.msra.mxu0 0.0
  %94 = vmatprep.subr.mxu0 0.0
  %95 = vmatpush2.msra.mxu0 0.0
  %96 = vmatprep.subr.mxu0 0.0
  %97 = vmatpush2.msra.mxu0 0.0
  %98 = vmatprep.mubr.f32.mxu0 0.0
  %99 = vmatmul.mubr.f32.gmra.mxu0 %v28
  %v100 = vpop.f32.mrf.mxu0
  %v101 = vadd.f32 %v25, %v100
  %v102 = vpop.f32.mrf.mxu0
  %103 = vdwg.mxu0
  %v104 = vmax.f32 %v101, 0.0
  %v105 = vlaneseq
  %v106 = vshrl.u32 %v105, 7
  %v107 = vsub.s32 0, %v106
  %v108 = vrot.slane %v18, %v107
  %vm109 = vcmask 80896
  %v111 = vsel %vm109, %v104, 0
  %vm113 = vcmask 1041408
  %v115 = vsel %vm113, %v17, 0
  %117 = vmatprep.subr.mxu0 0.0
  %118 = vmatpush1.msra.mxu0 0.0
  %119 = vmatprep.subr.mxu0 0.0
  %120 = vmatpush1.msra.mxu0 0.0
  %121 = vmatprep.subr.mxu0 0.0
  %122 = vmatpush1.msra.mxu0 0.0
  %123 = vmatprep.subr.mxu0 0.0
  %124 = vmatpush1.msra.mxu0 0.0
  %125 = vmatprep.subr.mxu0 0.0
  %126 = vmatpush1.msra.mxu0 0.0
  %127 = vmatprep.subr.mxu0 0.0
  %128 = vmatpush1.msra.mxu0 0.0
  %129 = vmatprep.subr.mxu0 0.0
  %130 = vmatpush1.msra.mxu0 0.0
  %131 = vmatprep.subr.mxu0 0.0
  %132 = vmatpush1.msra.mxu0 0.0
  %133 = vmatprep.subr.mxu0 0.0
  %134 = vmatpush1.msra.mxu0 0.0
  %135 = vmatprep.subr.mxu0 0.0
  %136 = vmatpush1.msra.mxu0 0.0
  %137 = vmatprep.subr.mxu0 0.0
  %138 = vmatpush1.msra.mxu0 0.0
  %139 = vmatprep.subr.mxu0 0.0
  %140 = vmatpush1.msra.mxu0 0.0
  %141 = vmatprep.subr.mxu0 0.0
  %142 = vmatpush1.msra.mxu0 0.0
  %143 = vmatprep.subr.mxu0 0.0
  %144 = vmatpush1.msra.mxu0 0.0
  %145 = vmatprep.subr.mxu0 0.0
  %146 = vmatpush1.msra.mxu0 %v115
  %147 = vmatprep.subr.mxu0 0.0
  %148 = vmatpush1.msra.mxu0 %v16
  %149 = vmatprep.subr.mxu0 0.0
  %150 = vmatpush2.msra.mxu0 0.0
  %151 = vmatprep.subr.mxu0 0.0
  %152 = vmatpush2.msra.mxu0 0.0
  %153 = vmatprep.subr.mxu0 0.0
  %154 = vmatpush2.msra.mxu0 0.0
  %155 = vmatprep.subr.mxu0 0.0
  %156 = vmatpush2.msra.mxu0 0.0
  %157 = vmatprep.subr.mxu0 0.0
  %158 = vmatpush2.msra.mxu0 0.0
  %159 = vmatprep.subr.mxu0 0.0
  %160 = vmatpush2.msra.mxu0 0.0
  %161 = vmatprep.subr.mxu0 0.0
  %162 = vmatpush2.msra.mxu0 0.0
  %163 = vmatprep.subr.mxu0 0.0
  %164 = vmatpush2.msra.mxu0 0.0
  %165 = vmatprep.subr.mxu0 0.0
  %166 = vmatpush2.msra.mxu0 0.0
  %167 = vmatprep.subr.mxu0 0.0
  %168 = vmatpush2.msra.mxu0 0.0
  %169 = vmatprep.subr.mxu0 0.0
  %170 = vmatpush2.msra.mxu0 0.0
  %171 = vmatprep.subr.mxu0 0.0
  %172 = vmatpush2.msra.mxu0 0.0
  %173 = vmatprep.subr.mxu0 0.0
  %174 = vmatpush2.msra.mxu0 0.0
  %175 = vmatprep.subr.mxu0 0.0
  %176 = vmatpush2.msra.mxu0 0.0
  %177 = vmatprep.subr.mxu0 0.0
  %178 = vmatpush2.msra.mxu0 0.0
  %179 = vmatprep.subr.mxu0 0.0
  %180 = vmatpush2.msra.mxu0 0.0
  %181 = vmatprep.mubr.f32.mxu0 0.0
  %182 = vmatmul.mubr.f32.gmra.mxu0 %v111
  %v183 = vpop.f32.mrf.mxu0
  %v184 = vadd.f32 %v108, %v183
  %v185 = vpop.f32.mrf.mxu0
  %186 = vdwg.mxu0
  %v187 = vmax.f32 %v184, 0.0
  %v188 = vlaneseq
  %v189 = vshrl.u32 %v188, 7
  %v190 = vsub.s32 0, %v189
  %v191 = vrot.slane %v21, %v190
  %v193 = vsel %vm109, %v187, 0
  %v196 = vsel %vm113, %v20, 0
  %198 = vmatprep.subr.mxu0 0.0
  %199 = vmatpush1.msra.mxu0 0.0
  %200 = vmatprep.subr.mxu0 0.0
  %201 = vmatpush1.msra.mxu0 0.0
  %202 = vmatprep.subr.mxu0 0.0
  %203 = vmatpush1.msra.mxu0 0.0
  %204 = vmatprep.subr.mxu0 0.0
  %205 = vmatpush1.msra.mxu0 0.0
  %206 = vmatprep.subr.mxu0 0.0
  %207 = vmatpush1.msra.mxu0 0.0
  %208 = vmatprep.subr.mxu0 0.0
  %209 = vmatpush1.msra.mxu0 0.0
  %210 = vmatprep.subr.mxu0 0.0
  %211 = vmatpush1.msra.mxu0 0.0
  %212 = vmatprep.subr.mxu0 0.0
  %213 = vmatpush1.msra.mxu0 0.0
  %214 = vmatprep.subr.mxu0 0.0
  %215 = vmatpush1.msra.mxu0 0.0
  %216 = vmatprep.subr.mxu0 0.0
  %217 = vmatpush1.msra.mxu0 0.0
  %218 = vmatprep.subr.mxu0 0.0
  %219 = vmatpush1.msra.mxu0 0.0
  %220 = vmatprep.subr.mxu0 0.0
  %221 = vmatpush1.msra.mxu0 0.0
  %222 = vmatprep.subr.mxu0 0.0
  %223 = vmatpush1.msra.mxu0 0.0
  %224 = vmatprep.subr.mxu0 0.0
  %225 = vmatpush1.msra.mxu0 0.0
  %226 = vmatprep.subr.mxu0 0.0
  %227 = vmatpush1.msra.mxu0 %v196
  %228 = vmatprep.subr.mxu0 0.0
  %229 = vmatpush1.msra.mxu0 %v19
  %230 = vmatprep.subr.mxu0 0.0
  %231 = vmatpush2.msra.mxu0 0.0
  %232 = vmatprep.subr.mxu0 0.0
  %233 = vmatpush2.msra.mxu0 0.0
  %234 = vmatprep.subr.mxu0 0.0
  %235 = vmatpush2.msra.mxu0 0.0
  %236 = vmatprep.subr.mxu0 0.0
  %237 = vmatpush2.msra.mxu0 0.0
  %238 = vmatprep.subr.mxu0 0.0
  %239 = vmatpush2.msra.mxu0 0.0
  %240 = vmatprep.subr.mxu0 0.0
  %241 = vmatpush2.msra.mxu0 0.0
  %242 = vmatprep.subr.mxu0 0.0
  %243 = vmatpush2.msra.mxu0 0.0
  %244 = vmatprep.subr.mxu0 0.0
  %245 = vmatpush2.msra.mxu0 0.0
  %246 = vmatprep.subr.mxu0 0.0
  %247 = vmatpush2.msra.mxu0 0.0
  %248 = vmatprep.subr.mxu0 0.0
  %249 = vmatpush2.msra.mxu0 0.0
  %250 = vmatprep.subr.mxu0 0.0
  %251 = vmatpush2.msra.mxu0 0.0
  %252 = vmatprep.subr.mxu0 0.0
  %253 = vmatpush2.msra.mxu0 0.0
  %254 = vmatprep.subr.mxu0 0.0
  %255 = vmatpush2.msra.mxu0 0.0
  %256 = vmatprep.subr.mxu0 0.0
  %257 = vmatpush2.msra.mxu0 0.0
  %258 = vmatprep.subr.mxu0 0.0
  %259 = vmatpush2.msra.mxu0 0.0
  %260 = vmatprep.subr.mxu0 0.0
  %261 = vmatpush2.msra.mxu0 0.0
  %262 = vmatprep.mubr.f32.mxu0 0.0
  %263 = vmatmul.mubr.f32.gmra.mxu0 %v193
  %v264 = vpop.f32.mrf.mxu0
  %v265 = vadd.f32 %v191, %v264
  %v266 = vpop.f32.mrf.mxu0
  %267 = vdwg.mxu0
  %269 = vrot.lane.b32.xlu0 %v265, 1
  %v270 = vpop.permute.xlu0 %269
  %v272 = vsub.f32 %v265, %v270
  %v273 = vmul.f32 %v272, 0.5
  %v274 = vtanh.pop %v273
  %v275 = vadd.f32 %v274, 1.0
  %v276 = vmul.f32 %v275, 0.5
  %v277 = vsub.f32 1.0, %v276
  %279 = vrot.lane.b32.xlu0 %v277, 127
  %v280 = vpop.permute.xlu0 %279
  %vm282 = vcmask 7168
  %v283 = vsel %vm282, %v280, %v276
  %vm284 = vcmask 15360
  %285 = vst.msk [vmem:[%s2] sm:$0xff] %vm284, %v283
  // Predicated region
  $region10: #{my_module_forward.1} parent=0 // pred_check
    _
  $region11: #{my_module_forward.1} parent=0 // pred_check_branch
    %287 = sbr.rel (0) target = $region13
  $region12: #{my_module_forward.1} parent=0 // pred_region
    _
  $region13: #{my_module_forward.1} parent=0 // pred_fallthru
    _
  // Predicated region
  $region14: #{my_module_forward.1} parent=0 // pred_check
    _
  $region15: #{my_module_forward.1} parent=0 // pred_check_branch
    %289 = sbr.rel (0) target = $region17
  $region16: #{my_module_forward.1} parent=0 // pred_region
    _
  $region17: #{my_module_forward.1} parent=0 // pred_fallthru
    _

</llo_original>
